<compile_context>
chip_gen: v7x
topology: tpu7x:2x2x1
jax: 0.10.0
libtpu: 0.0.40
codegen_flags: <defaults>
</compile_context>

<pallas_src>
import functools

import jax
import jax.numpy as jnp
import numpy as np
from jax.experimental import pallas as pl
from jax.experimental.pallas import tpu as pltpu

_POOL_SIZES = (1, 2, 4)                              # AdaptiveAvgPool2d targets
_NUM_BINS = sum(s * s for s in _POOL_SIZES)          # 21


def _round_up(x, m):
    return ((x + m - 1) // m) * m


def _ceil_div(a, b):
    return -(-a // b)


# --------------------------- host-side constant prep ------------------------

def _adaptive_bins(in_size, out_size):
    """PyTorch AdaptiveAvgPool2d bin edges along one axis."""
    starts = [int(np.floor(i * in_size / out_size)) for i in range(out_size)]
    ends = [int(np.ceil((i + 1) * in_size / out_size)) for i in range(out_size)]
    return starts, ends


@functools.lru_cache(maxsize=None)
def _pool_matrix(H, W):
    """(H*W, 21) f32 matrix; column b averages the pixels of pyramid bin b
    (exact PyTorch adaptive-pool bins, including non-divisible H/W).
    Shape-only constant: lru-cached on host, constant-folded under jit."""
    P = np.zeros((H * W, _NUM_BINS), dtype=np.float32)
    b = 0
    for o in _POOL_SIZES:
        hs, he = _adaptive_bins(H, o)
        ws, we = _adaptive_bins(W, o)
        for i in range(o):
            for j in range(o):
                mask = np.zeros((H, W), dtype=np.float32)
                mask[hs[i]:he[i], ws[j]:we[j]] = 1.0
                P[:, b] = (mask / mask.sum()).reshape(-1)
                b += 1
    return P


@functools.lru_cache(maxsize=None)
def _torch_channel_index(C):
    """idx[c, b] = position of (input channel c, pyramid bin b) in the torch
    cat-of-flattened-pools (N, 21*C) channel layout."""
    idx = np.zeros((C, _NUM_BINS), dtype=np.int32)
    bin_off = 0
    ch_off = 0
    for o in _POOL_SIZES:
        bins = o * o
        idx[:, bin_off:bin_off + bins] = (
            ch_off + np.arange(C)[:, None] * bins + np.arange(bins)[None, :])
        bin_off += bins
        ch_off += C * bins
    return idx


# ------------------------------- Pallas kernels -----------------------------

def _pool_matmul_kernel(x_ref, p_ref, y_ref):
    # x_ref: (block_rows, HW)  activations ((n,c) rows, flattened pixels)
    # p_ref: (HW, 21)          VMEM-resident pooling matrix (constant index map)
    # y_ref: (block_rows, 21)  pooled features, f32
    y_ref[...] = jnp.dot(x_ref[...], p_ref[...],
                         preferred_element_type=jnp.float32)


def _proj_kernel(f_ref, w_ref, b_ref, o_ref):
    # f_ref: (N, 21*C)  pooled features in torch-matched order
    # w_ref: (21*C, OC) reordered 1x1-conv weight
    # b_ref: (1, OC)    bias
    # o_ref: (N, OC)
    o_ref[...] = (jnp.dot(f_ref[...], w_ref[...],
                          preferred_element_type=jnp.float32)
                  + b_ref[...]).astype(o_ref.dtype)


# --------------------------------- wrapper -----------------------------------

def pyramid_pooling(x, conv_weight, conv_bias, *,
                    target_block_rows=512,
                    vmem_budget_bytes=4 << 20):
    """x: (N, C, H, W); conv_weight: (OC, 21*C, 1, 1); conv_bias: (OC,).
    Returns (N, OC, 1, 1) — the 1x1 conv applied to the (N, 21*C, 1, 1) SPP
    feature (see semantics note at the top of the file).  jit-compatible."""
    N, C, H, W = x.shape
    OC = conv_weight.shape[0]
    assert conv_weight.shape[1] == _NUM_BINS * C
    HW = H * W
    rows = N * C

    # Tiny constants (stay f32; they are not an HBM bottleneck).
    P = jnp.asarray(_pool_matrix(H, W))                          # (HW, 21)
    idx = _torch_channel_index(C)                                # (C, 21) numpy
    w2 = conv_weight.reshape(OC, _NUM_BINS * C)
    wr = jnp.transpose(w2[:, idx], (1, 2, 0)).reshape(C * _NUM_BINS, OC)
    bias = conv_bias.reshape(1, OC).astype(jnp.float32)

    # ---- Stage 1: pooled features  Y[(n,c), b] = sum_p x[(n,c), p] * P[p, b]
    x2 = x.reshape(rows, HW)                                     # free reshape

    itemsize = jnp.dtype(x2.dtype).itemsize
    # Row-block sizing: keep the double-buffered x tile inside a conservative
    # VMEM budget and avoid pathological zero-row padding.
    max_rows_budget = max(8, ((vmem_budget_bytes // max(1, HW * itemsize)) // 8) * 8)
    rows8 = _round_up(rows, 8)
    target = max(8, min(rows8, target_block_rows, max_rows_budget))
    nblocks = _ceil_div(rows8, target)
    block_rows = _round_up(_ceil_div(rows8, nblocks), 8)
    rows_pad = nblocks * block_rows

    if rows_pad != rows:                                         # skipped in the common case
        x2 = jnp.pad(x2, ((0, rows_pad - rows), (0, 0)))

    cost = pl.CostEstimate(
        flops=2 * rows_pad * HW * _NUM_BINS,
        transcendentals=0,
        bytes_accessed=(rows_pad * HW * itemsize + HW * _NUM_BINS * 4
                        + rows_pad * _NUM_BINS * 4),
    )

    y = pl.pallas_call(
        _pool_matmul_kernel,
        out_shape=jax.ShapeDtypeStruct((rows_pad, _NUM_BINS), jnp.float32),
        grid=(nblocks,),
        in_specs=[
            pl.BlockSpec((block_rows, HW), lambda i: (i, 0)),
            pl.BlockSpec((HW, _NUM_BINS), lambda i: (0, 0)),     # resident, DMA'd once
        ],
        out_specs=pl.BlockSpec((block_rows, _NUM_BINS), lambda i: (i, 0)),
        compiler_params=pltpu.CompilerParams(
            dimension_semantics=("parallel",)),
        cost_estimate=cost,
    )(x2, P)

    # ---- Stage 2: tiny projection  out = f @ Wr + bias
    f = y[:rows].reshape(N, C * _NUM_BINS)                       # (N, 21*C), ~KBs

    out = pl.pallas_call(
        _proj_kernel,
        out_shape=jax.ShapeDtypeStruct((N, OC), jnp.float32),
    )(f, wr, bias)

    return out.reshape(N, OC, 1, 1)


# ------------------------------ plain-JAX reference -------------------------

def pyramid_pooling_ref(x, conv_weight, conv_bias):
    """f32 reference of the intended SPP semantics (H, W divisible by the pool
    sizes in this test)."""
    N, C, H, W = x.shape
    OC = conv_weight.shape[0]
    feats = []
    for o in _POOL_SIZES:
        p = x.reshape(N, C, o, H // o, o, W // o).mean(axis=(3, 5))   # (N,C,o,o)
        feats.append(p.reshape(N, C * o * o))
    f = jnp.concatenate(feats, axis=1)                                # (N, 21*C)
    w = conv_weight.reshape(OC, _NUM_BINS * C)
    out = f @ w.T + conv_bias
    return out.reshape(N, OC, 1, 1)


if __name__ == "__main__":
    key = jax.random.PRNGKey(0)
    k1, k2, k3 = jax.random.split(key, 3)
    N, C, H, W = 2, 4, 16, 16
    OC = 8

    x = jax.random.normal(k1, (N, C, H, W), jnp.float32)
    conv_weight = jax.random.normal(k2, (OC, _NUM_BINS * C, 1, 1), jnp.float32) * 0.05
    conv_bias = jax.random.normal(k3, (OC,), jnp.float32) * 0.01

    ref = pyramid_pooling_ref(x, conv_weight, conv_bias)

    # Jitted path (weight reorder is pure jnp, so tracing is fine).
    fwd = jax.jit(pyramid_pooling)
    out = jax.block_until_ready(fwd(x, conv_weight, conv_bias))
    np.testing.assert_allclose(np.asarray(out), np.asarray(ref),
                               rtol=1e-4, atol=1e-4)

    # Eager path (covers the non-jit call sequence as well).
    out_eager = jax.block_until_ready(pyramid_pooling(x, conv_weight, conv_bias))
    np.testing.assert_allclose(np.asarray(out_eager), np.asarray(ref),
                               rtol=1e-4, atol=1e-4)

    print("KERNEL_OK")
</pallas_src>

<mosaic_0001>
module attributes {stable_mosaic.version = 11 : i64} {
  func.func @_proj_kernel(%arg0: memref<2x84xf32, #tpu.memory_space<vmem>>, %arg1: memref<84x8xf32, #tpu.memory_space<vmem>>, %arg2: memref<1x8xf32, #tpu.memory_space<vmem>>, %arg3: memref<2x8xf32, #tpu.memory_space<vmem>>) attributes {dimension_semantics = [], scalar_prefetch = 0 : i64, scratch_operands = 0 : i64, tpu.core_type = #tpu.core_type<tc>} {
    %c0 = arith.constant 0 : index
    %c0_0 = arith.constant 0 : index
    %0 = vector.load %arg0[%c0, %c0_0] : memref<2x84xf32, #tpu.memory_space<vmem>>, vector<2x84xf32>
    %c0_1 = arith.constant 0 : index
    %c0_2 = arith.constant 0 : index
    %1 = vector.load %arg1[%c0_1, %c0_2] : memref<84x8xf32, #tpu.memory_space<vmem>>, vector<84x8xf32>
    %cst = arith.constant dense<0.000000e+00> : vector<2x8xf32>
    %2 = tpu.matmul %0, %1, %cst {dimension_numbers = #tpu.dot_dimension_numbers<[1], [0], [0], [1], [0, 0, 1, 1], [], []>} : vector<2x84xf32>, vector<84x8xf32>, vector<2x8xf32> -> vector<2x8xf32>
    %c0_3 = arith.constant 0 : index
    %c0_4 = arith.constant 0 : index
    %3 = vector.load %arg2[%c0_3, %c0_4] : memref<1x8xf32, #tpu.memory_space<vmem>>, vector<1x8xf32>
    %4 = vector.broadcast %3 : vector<1x8xf32> to vector<2x8xf32>
    %5 = arith.addf %2, %4 : vector<2x8xf32>
    %c0_5 = arith.constant 0 : index
    %c0_6 = arith.constant 0 : index
    %6 = vector.load %arg3[%c0_5, %c0_6] : memref<2x8xf32, #tpu.memory_space<vmem>>, vector<2x8xf32>
    tpu.vector_store %arg3[%c0_5, %c0_6], %5 {strides = array<i32>} : memref<2x8xf32, #tpu.memory_space<vmem>>, vector<2x8xf32>,
    return
  }
}

module attributes {stable_mosaic.version = 11 : i64} {
  func.func @_pool_matmul_kernel(%arg0: i32, %arg1: memref<8x256xf32, #tpu.memory_space<vmem>>, %arg2: memref<256x21xf32, #tpu.memory_space<vmem>>, %arg3: memref<8x21xf32, #tpu.memory_space<vmem>>) attributes {dimension_semantics = [#tpu.dimension_semantics<parallel>], iteration_bounds = array<i64: 1>, scalar_prefetch = 0 : i64, scratch_operands = 0 : i64, tpu.core_type = #tpu.core_type<tc>, window_params = [{transform_indices = @transform_0, window_bounds = array<i64: 8, 256>}, {pipeline_mode = #tpu.pipeline_mode<synchronous>, transform_indices = @transform_1, window_bounds = array<i64: 256, 21>}, {transform_indices = @transform_2, window_bounds = array<i64: 8, 21>}]} {
    %c0 = arith.constant 0 : index
    %c0_0 = arith.constant 0 : index
    %0 = vector.load %arg1[%c0, %c0_0] : memref<8x256xf32, #tpu.memory_space<vmem>>, vector<8x256xf32>
    %c0_1 = arith.constant 0 : index
    %c0_2 = arith.constant 0 : index
    %1 = vector.load %arg2[%c0_1, %c0_2] : memref<256x21xf32, #tpu.memory_space<vmem>>, vector<256x21xf32>
    %cst = arith.constant dense<0.000000e+00> : vector<8x21xf32>
    %2 = tpu.matmul %0, %1, %cst {dimension_numbers = #tpu.dot_dimension_numbers<[1], [0], [0], [1], [0, 0, 1, 1], [], []>} : vector<8x256xf32>, vector<256x21xf32>, vector<8x21xf32> -> vector<8x21xf32>
    %c0_3 = arith.constant 0 : index
    %c0_4 = arith.constant 0 : index
    %3 = vector.load %arg3[%c0_3, %c0_4] : memref<8x21xf32, #tpu.memory_space<vmem>>, vector<8x21xf32>
    tpu.vector_store %arg3[%c0_3, %c0_4], %2 {strides = array<i32>} : memref<8x21xf32, #tpu.memory_space<vmem>>, vector<8x21xf32>,
    return
  }
  func.func @transform_0(%arg0: i32) -> (i32, i32) {
    %c0_i32 = arith.constant 0 : i32
    %c0_i32_0 = arith.constant 0 : i32
    return %arg0, %c0_i32 : i32, i32
  }
  func.func @transform_1(%arg0: i32) -> (i32, i32) {
    %c0_i32 = arith.constant 0 : i32
    %c0_i32_0 = arith.constant 0 : i32
    %c0_i32_1 = arith.constant 0 : i32
    return %c0_i32, %c0_i32_0 : i32, i32
  }
  func.func @transform_2(%arg0: i32) -> (i32, i32) {
    %c0_i32 = arith.constant 0 : i32
    %c0_i32_0 = arith.constant 0 : i32
    return %arg0, %c0_i32 : i32, i32
  }
}

</mosaic_0001>

<llo_original>
// kernel: pyramid_pooling.3
$region0: #{pyramid_pooling.3}
  #allocation0 [shape = 'u32[]', space=smem, size = 0x4, offset = 0x4, fixed_abs, tag = 'smem constant byte address 0x4 - core index']
  #allocation1 [shape = 'u32[144,128]{1,0:T(1,128)}', space=vmem, size = 0x12000, scoped, tag = 'internal scratch']
  %s0 = inlined_call_operand.vmem [shape: f32[2,84], index: 0, kind: input, shape index: {}]
  %s1 = inlined_call_operand.vmem [shape: f32[84,8], index: 1, kind: input, shape index: {}]
  %s2 = inlined_call_operand.vmem [shape: f32[1,8], index: 2, kind: input, shape index: {}]
  %s3 = inlined_call_operand.hbm [shape: f32[2,8], index: 3, kind: output, shape index: {}]
  %s4 = sld [smem:[#allocation0]]
  $region22: #{pyramid_pooling.3} parent=0
    _
  %s6 = ssub.s32 1, %s4
  %s7 = scalar_select 0, %s6, %s4
  $region1: #{pyramid_pooling.3} parent=0
    #allocation2 [shape = 'u8[1024]{0}', space=vmem, size = 0x400, scoped, tag = 'output window, operand 0, single buffered']
    #allocation3 [shape = 's32[1]{0}', space=sflag, size = 0x4, scoped, tag = 'scoped memory for pyramid_pooling.3']
    %8 = vsyncpa [#allocation3], 0
    // Predicated region
    $region2: #{pyramid_pooling.3} parent=1 // pred_check
      _
    $region3: #{pyramid_pooling.3} parent=1 // pred_check_branch
      %10 = sbr.rel (0) target = $region5
    $region4: #{pyramid_pooling.3} parent=1 // pred_region
      _
    $region5: #{pyramid_pooling.3} parent=1 // pred_fallthru
      _
    // Predicated region
    $region6: #{pyramid_pooling.3} parent=1 // pred_check
      _
    $region7: #{pyramid_pooling.3} parent=1 // pred_check_branch
      %12 = sbr.rel (0) target = $region9
    $region8: #{pyramid_pooling.3} parent=1 // pred_region
      _
    $region9: #{pyramid_pooling.3} parent=1 // pred_fallthru
      _
    // Predicated region
    $region10: #{pyramid_pooling.3} parent=1 // pred_check
      _
    $region11: #{pyramid_pooling.3} parent=1 // pred_check_branch
      %14 = sbr.rel (0) target = $region13
    $region12: #{pyramid_pooling.3} parent=1 // pred_region
      _
    $region13: #{pyramid_pooling.3} parent=1 // pred_fallthru
      _
    %v15 = vld [vmem:[%s0] sm:$0x3]
    %v16 = vld [vmem:[%s1] sm:$0xff]
    %v17 = vld [vmem:[%s1 + $0x8] sm:$0xff]
    %v18 = vld [vmem:[%s1 + $0x10] sm:$0xff]
    %v19 = vld [vmem:[%s1 + $0x18] sm:$0xff]
    %v20 = vld [vmem:[%s1 + $0x20] sm:$0xff]
    %v21 = vld [vmem:[%s1 + $0x28] sm:$0xff]
    %v22 = vld [vmem:[%s1 + $0x30] sm:$0xff]
    %v23 = vld [vmem:[%s1 + $0x38] sm:$0xff]
    %v24 = vld [vmem:[%s1 + $0x40] sm:$0xff]
    %v25 = vld [vmem:[%s1 + $0x48] sm:$0xff]
    %v26 = vld [vmem:[%s1 + $0x50] sm:$0xf]
    %v27 = vld [vmem:[%s2] sm:$0x1]
    %v29 = vlaneseq
    %v30 = vshrl.u32 %v29, 7
    %v31 = vsub.s32 0, %v30
    %v32 = vrot.slane %v27, %v31
    %vm34 = vcmask 687104
    %v36 = vsel %vm34, %v15, 0
    %vm38 = vcmask 1043456
    %v40 = vsel %vm38, %v26, 0
    %42 = vmatprep.subr.mxu0 0.0
    %43 = vmatpush1.msra.mxu0 %v16
    %44 = vmatprep.subr.mxu0 0.0
    %45 = vmatpush1.msra.mxu0 %v17
    %46 = vmatprep.subr.mxu0 0.0
    %47 = vmatpush1.msra.mxu0 %v18
    %48 = vmatprep.subr.mxu0 0.0
    %49 = vmatpush1.msra.mxu0 %v19
    %50 = vmatprep.subr.mxu0 0.0
    %51 = vmatpush1.msra.mxu0 %v20
    %52 = vmatprep.subr.mxu0 0.0
    %53 = vmatpush1.msra.mxu0 %v21
    %54 = vmatprep.subr.mxu0 0.0
    %55 = vmatpush1.msra.mxu0 %v22
    %56 = vmatprep.subr.mxu0 0.0
    %57 = vmatpush1.msra.mxu0 %v23
    %58 = vmatprep.subr.mxu0 0.0
    %59 = vmatpush1.msra.mxu0 %v24
    %60 = vmatprep.subr.mxu0 0.0
    %61 = vmatpush1.msra.mxu0 %v25
    %62 = vmatprep.subr.mxu0 0.0
    %63 = vmatpush1.msra.mxu0 %v40
    %64 = vmatprep.subr.mxu0 0.0
    %65 = vmatpush1.msra.mxu0 0.0
    %66 = vmatprep.subr.mxu0 0.0
    %67 = vmatpush1.msra.mxu0 0.0
    %68 = vmatprep.subr.mxu0 0.0
    %69 = vmatpush1.msra.mxu0 0.0
    %70 = vmatprep.subr.mxu0 0.0
    %71 = vmatpush1.msra.mxu0 0.0
    %72 = vmatprep.subr.mxu0 0.0
    %73 = vmatpush1.msra.mxu0 0.0
    %74 = vmatprep.subr.mxu0 0.0
    %75 = vmatpush1.msra.mxu0 0.0
    %76 = vmatprep.subr.mxu0 0.0
    %77 = vmatpush1.msra.mxu0 0.0
    %78 = vmatprep.subr.mxu0 0.0
    %79 = vmatpush1.msra.mxu0 0.0
    %80 = vmatprep.subr.mxu0 0.0
    %81 = vmatpush1.msra.mxu0 0.0
    %82 = vmatprep.subr.mxu0 0.0
    %83 = vmatpush1.msra.mxu0 0.0
    %84 = vmatprep.subr.mxu0 0.0
    %85 = vmatpush1.msra.mxu0 0.0
    %86 = vmatprep.subr.mxu0 0.0
    %87 = vmatpush1.msra.mxu0 0.0
    %88 = vmatprep.subr.mxu0 0.0
    %89 = vmatpush1.msra.mxu0 0.0
    %90 = vmatprep.subr.mxu0 0.0
    %91 = vmatpush1.msra.mxu0 0.0
    %92 = vmatprep.subr.mxu0 0.0
    %93 = vmatpush1.msra.mxu0 0.0
    %94 = vmatprep.subr.mxu0 0.0
    %95 = vmatpush1.msra.mxu0 0.0
    %96 = vmatprep.subr.mxu0 0.0
    %97 = vmatpush1.msra.mxu0 0.0
    %98 = vmatprep.subr.mxu0 0.0
    %99 = vmatpush1.msra.mxu0 0.0
    %100 = vmatprep.subr.mxu0 0.0
    %101 = vmatpush1.msra.mxu0 0.0
    %102 = vmatprep.subr.mxu0 0.0
    %103 = vmatpush1.msra.mxu0 0.0
    %104 = vmatprep.subr.mxu0 0.0
    %105 = vmatpush1.msra.mxu0 0.0
    %106 = vmatprep.mubr.f32.mxu0 0.0
    %107 = vmatmul.mubr.f32.gmra.mrb[0].mxu0 %v36
    %v108 = vpop.f32.mrb[0].mxu0
    %v109 = vadd.f32 %v32, %v108
    %v110 = vpop.f32.mrb[0].mxu0
    %111 = vdwg.mxu0
    %vm112 = vcmask 58368
    %113 = vst.msk [vmem:[#allocation2] sm:$0x3] %vm112, %v109
    // Predicated region
    $region14: #{pyramid_pooling.3} parent=1 // pred_check
      _
    $region15: #{pyramid_pooling.3} parent=1 // pred_check_branch
      %115 = sbr.rel (0) target = $region17
    $region16: #{pyramid_pooling.3} parent=1 // pred_region
      %s117 = ssub.s32 32, 32
      %118 = vsyncadd [#allocation3], %s117
      %s120 = sshll.u32 [#allocation2], 4
      %s121 = int_to_ptr.vmem [resolvable:$true] %s120
      %123 = dma.vmem_to_hbm [thread:$0]  %s121, 32, %s3, [#allocation3]
    $region17: #{pyramid_pooling.3} parent=1 // pred_fallthru
      _
    // Predicated region
    $region18: #{pyramid_pooling.3} parent=1 // pred_check
      _
    $region19: #{pyramid_pooling.3} parent=1 // pred_check_branch
      %125 = sbr.rel (0) target = $region21
    $region20: #{pyramid_pooling.3} parent=1 // pred_region
      %126 = dma.done [#allocation3], 32
    $region21: #{pyramid_pooling.3} parent=1 // pred_fallthru
      _
    %127 = vsyncpa [#allocation3], 1

// kernel: pyramid_pooling.2
$region0: #{pyramid_pooling.2}
  #allocation0 [shape = 'u32[]', space=smem, size = 0x4, offset = 0x4, fixed_abs, tag = 'smem constant byte address 0x4 - core index']
  #allocation1 [shape = 'u32[144,128]{1,0:T(1,128)}', space=vmem, size = 0x12000, scoped, tag = 'internal scratch']
  %s0 = inlined_call_operand.vmem [shape: f32[8,256], index: 0, kind: input, shape index: {}]
  %s1 = inlined_call_operand.vmem [shape: f32[256,21], index: 1, kind: input, shape index: {}]
  %s2 = inlined_call_operand.vmem [shape: f32[8,21], index: 2, kind: output, shape index: {}]
  %s3 = sld [smem:[#allocation0]]
  $region18: #{pyramid_pooling.2} parent=0
    _
  %s5 = ssub.s32 1, %s3
  %s6 = scalar_select 0, %s5, %s3
  // Predicated region
  $region2: #{pyramid_pooling.2} parent=0 // pred_check
    _
  $region3: #{pyramid_pooling.2} parent=0 // pred_check_branch
    %8 = sbr.rel (0) target = $region5
  $region4: #{pyramid_pooling.2} parent=0 // pred_region
    _
  $region5: #{pyramid_pooling.2} parent=0 // pred_fallthru
    _
  // Predicated region
  $region6: #{pyramid_pooling.2} parent=0 // pred_check
    _
  $region7: #{pyramid_pooling.2} parent=0 // pred_check_branch
    %10 = sbr.rel (0) target = $region9
  $region8: #{pyramid_pooling.2} parent=0 // pred_region
    _
  $region9: #{pyramid_pooling.2} parent=0 // pred_fallthru
    _
  %v11 = vld [vmem:[%s0] sm:$0xff]
  %v12 = vld [vmem:[%s0 + $0x8] sm:$0xff]
  %v13 = vld [vmem:[%s1] sm:$0xff]
  %v14 = vld [vmem:[%s1 + $0x8] sm:$0xff]
  %v15 = vld [vmem:[%s1 + $0x10] sm:$0xff]
  %v16 = vld [vmem:[%s1 + $0x18] sm:$0xff]
  %v17 = vld [vmem:[%s1 + $0x20] sm:$0xff]
  %v18 = vld [vmem:[%s1 + $0x28] sm:$0xff]
  %v19 = vld [vmem:[%s1 + $0x30] sm:$0xff]
  %v20 = vld [vmem:[%s1 + $0x38] sm:$0xff]
  %v21 = vld [vmem:[%s1 + $0x40] sm:$0xff]
  %v22 = vld [vmem:[%s1 + $0x48] sm:$0xff]
  %v23 = vld [vmem:[%s1 + $0x50] sm:$0xff]
  %v24 = vld [vmem:[%s1 + $0x58] sm:$0xff]
  %v25 = vld [vmem:[%s1 + $0x60] sm:$0xff]
  %v26 = vld [vmem:[%s1 + $0x68] sm:$0xff]
  %v27 = vld [vmem:[%s1 + $0x70] sm:$0xff]
  %v28 = vld [vmem:[%s1 + $0x78] sm:$0xff]
  %v29 = vld [vmem:[%s1 + $0x80] sm:$0xff]
  %v30 = vld [vmem:[%s1 + $0x88] sm:$0xff]
  %v31 = vld [vmem:[%s1 + $0x90] sm:$0xff]
  %v32 = vld [vmem:[%s1 + $0x98] sm:$0xff]
  %v33 = vld [vmem:[%s1 + $0xa0] sm:$0xff]
  %v34 = vld [vmem:[%s1 + $0xa8] sm:$0xff]
  %v35 = vld [vmem:[%s1 + $0xb0] sm:$0xff]
  %v36 = vld [vmem:[%s1 + $0xb8] sm:$0xff]
  %v37 = vld [vmem:[%s1 + $0xc0] sm:$0xff]
  %v38 = vld [vmem:[%s1 + $0xc8] sm:$0xff]
  %v39 = vld [vmem:[%s1 + $0xd0] sm:$0xff]
  %v40 = vld [vmem:[%s1 + $0xd8] sm:$0xff]
  %v41 = vld [vmem:[%s1 + $0xe0] sm:$0xff]
  %v42 = vld [vmem:[%s1 + $0xe8] sm:$0xff]
  %v43 = vld [vmem:[%s1 + $0xf0] sm:$0xff]
  %v44 = vld [vmem:[%s1 + $0xf8] sm:$0xff]
  %45 = vmatprep.subr.mxu0 0.0
  %46 = vmatpush1.msra.mxu0 %v13
  %47 = vmatprep.subr.mxu0 0.0
  %48 = vmatpush1.msra.mxu0 %v14
  %49 = vmatprep.subr.mxu0 0.0
  %50 = vmatpush1.msra.mxu0 %v15
  %51 = vmatprep.subr.mxu0 0.0
  %52 = vmatpush1.msra.mxu0 %v16
  %53 = vmatprep.subr.mxu0 0.0
  %54 = vmatpush1.msra.mxu0 %v17
  %55 = vmatprep.subr.mxu0 0.0
  %56 = vmatpush1.msra.mxu0 %v18
  %57 = vmatprep.subr.mxu0 0.0
  %58 = vmatpush1.msra.mxu0 %v19
  %59 = vmatprep.subr.mxu0 0.0
  %60 = vmatpush1.msra.mxu0 %v20
  %61 = vmatprep.subr.mxu0 0.0
  %62 = vmatpush1.msra.mxu0 %v21
  %63 = vmatprep.subr.mxu0 0.0
  %64 = vmatpush1.msra.mxu0 %v22
  %65 = vmatprep.subr.mxu0 0.0
  %66 = vmatpush1.msra.mxu0 %v23
  %67 = vmatprep.subr.mxu0 0.0
  %68 = vmatpush1.msra.mxu0 %v24
  %69 = vmatprep.subr.mxu0 0.0
  %70 = vmatpush1.msra.mxu0 %v25
  %71 = vmatprep.subr.mxu0 0.0
  %72 = vmatpush1.msra.mxu0 %v26
  %73 = vmatprep.subr.mxu0 0.0
  %74 = vmatpush1.msra.mxu0 %v27
  %75 = vmatprep.subr.mxu0 0.0
  %76 = vmatpush1.msra.mxu0 %v28
  %77 = vmatprep.subr.mxu0 0.0
  %78 = vmatpush1.msra.mxu0 %v29
  %79 = vmatprep.subr.mxu0 0.0
  %80 = vmatpush1.msra.mxu0 %v30
  %81 = vmatprep.subr.mxu0 0.0
  %82 = vmatpush1.msra.mxu0 %v31
  %83 = vmatprep.subr.mxu0 0.0
  %84 = vmatpush1.msra.mxu0 %v32
  %85 = vmatprep.subr.mxu0 0.0
  %86 = vmatpush1.msra.mxu0 %v33
  %87 = vmatprep.subr.mxu0 0.0
  %88 = vmatpush1.msra.mxu0 %v34
  %89 = vmatprep.subr.mxu0 0.0
  %90 = vmatpush1.msra.mxu0 %v35
  %91 = vmatprep.subr.mxu0 0.0
  %92 = vmatpush1.msra.mxu0 %v36
  %93 = vmatprep.subr.mxu0 0.0
  %94 = vmatpush1.msra.mxu0 %v37
  %95 = vmatprep.subr.mxu0 0.0
  %96 = vmatpush1.msra.mxu0 %v38
  %97 = vmatprep.subr.mxu0 0.0
  %98 = vmatpush1.msra.mxu0 %v39
  %99 = vmatprep.subr.mxu0 0.0
  %100 = vmatpush1.msra.mxu0 %v40
  %101 = vmatprep.subr.mxu0 0.0
  %102 = vmatpush1.msra.mxu0 %v41
  %103 = vmatprep.subr.mxu0 0.0
  %104 = vmatpush1.msra.mxu0 %v42
  %105 = vmatprep.subr.mxu0 0.0
  %106 = vmatpush1.msra.mxu0 %v43
  %107 = vmatprep.subr.mxu0 0.0
  %108 = vmatpush1.msra.mxu0 %v44
  %109 = vmatprep.mubr.f32.mxu0 %v12
  %110 = vmatmul.mubr.f32.gmra.mrb[0].mxu0 %v11
  %v111 = vpop.f32.mrb[0].mxu0
  %v112 = vadd.f32 0.0, %v111
  %v113 = vpop.f32.mrb[0].mxu0
  %114 = vdwg.mxu0
  %vm115 = vcmask 171008
  %116 = vst.msk [vmem:[%s2] sm:$0xff] %vm115, %v112
  // Predicated region
  $region10: #{pyramid_pooling.2} parent=0 // pred_check
    _
  $region11: #{pyramid_pooling.2} parent=0 // pred_check_branch
    %118 = sbr.rel (0) target = $region13
  $region12: #{pyramid_pooling.2} parent=0 // pred_region
    _
  $region13: #{pyramid_pooling.2} parent=0 // pred_fallthru
    _
  // Predicated region
  $region14: #{pyramid_pooling.2} parent=0 // pred_check
    _
  $region15: #{pyramid_pooling.2} parent=0 // pred_check_branch
    %120 = sbr.rel (0) target = $region17
  $region16: #{pyramid_pooling.2} parent=0 // pred_region
    _
  $region17: #{pyramid_pooling.2} parent=0 // pred_fallthru
    _

</llo_original>
